<compile_context>
chip_gen: v7x
topology: tpu7x:2x2x1
jax: 0.10.0
libtpu: 0.0.40
codegen_flags: <defaults>
</compile_context>

<pallas_src>
import functools

import jax
import jax.numpy as jnp
from jax.experimental import pallas as pl
from jax.experimental.pallas import tpu as pltpu


def _softmax_xent_rows_kernel(x_ref, y_ref, loss_ref, *, n_total, tile_n):
    """Per-row softmax cross-entropy for one (tile_n, C) tile of logits."""
    i = pl.program_id(0)

    x = x_ref[...].astype(jnp.float32)        # (tile_n, C) cast in-kernel
    y = y_ref[...]                             # (tile_n, 1) int32
    tn, c = x.shape

    # Row-validity mask for the (possibly out-of-bounds) last tile.
    row = jax.lax.broadcasted_iota(jnp.int32, (tn, 1), 0) + i * tile_n
    valid = row < n_total                      # (tile_n, 1) bool

    # Zero out garbage rows so exp/log never see out-of-bounds data.
    x = jnp.where(valid, x, 0.0)

    # Numerically stable logsumexp along the class (lane) axis.
    m = jnp.max(x, axis=-1, keepdims=True)                      # (tile_n, 1)
    s = jnp.sum(jnp.exp(x - m), axis=-1, keepdims=True)         # (tile_n, 1)
    lse = m + jnp.log(s)

    # x[i, y[i]] via compare+select+reduce (rides VALU/XLU slack; no dynamic
    # vreg gather on TPU, and no need to burn MXU on a one-hot matmul).
    class_ids = jax.lax.broadcasted_iota(jnp.int32, (tn, c), 1)
    picked = jnp.sum(jnp.where(class_ids == y, x, 0.0), axis=-1, keepdims=True)

    loss_ref[...] = jnp.where(valid, lse - picked, 0.0)


def softmax_cross_entropy(x: jax.Array, y: jax.Array, *, tile_n: int | None = None) -> jax.Array:
    """x: (N, C) float logits (any float dtype), y: (N,) int class indices.

    Returns the scalar f32 mean softmax cross-entropy loss.
    """
    n, c = x.shape
    itemsize = jnp.dtype(x.dtype).itemsize

    if tile_n is None:
        # ~8 MiB per x input buffer: with double buffering that is ~16 MiB,
        # safely under the default scoped VMEM limit on every chip (and well
        # under v7x's 64 MiB physical VMEM), while being large enough to
        # amortize per-grid-step overhead. Sublane-align to 8 rows.
        bytes_per_row = max(1, c * itemsize)
        cap = max(8, ((8 * 1024 * 1024) // bytes_per_row) // 8 * 8)
        tile_n = min(n, cap)

    num_tiles = pl.cdiv(n, tile_n)
    y2d = y.astype(jnp.int32).reshape(n, 1)

    kernel = functools.partial(_softmax_xent_rows_kernel, n_total=n, tile_n=tile_n)

    per_row_loss = pl.pallas_call(
        kernel,
        out_shape=jax.ShapeDtypeStruct((n, 1), jnp.float32),
        grid=(num_tiles,),
        in_specs=[
            pl.BlockSpec((tile_n, c), lambda i: (i, 0)),
            pl.BlockSpec((tile_n, 1), lambda i: (i, 0)),
        ],
        out_specs=pl.BlockSpec((tile_n, 1), lambda i: (i, 0)),
        compiler_params=pltpu.CompilerParams(
            dimension_semantics=("parallel",),
        ),
        cost_estimate=pl.CostEstimate(
            flops=6 * n * c,
            transcendentals=n * c + n,
            bytes_accessed=n * c * itemsize + n * 4 + n * 4,
        ),
    )(x, y2d)

    # Final reduction uses the GLOBAL batch size (padded rows were masked to 0).
    return jnp.sum(per_row_loss) / jnp.float32(n)


def _reference(x, y):
    lse = jax.scipy.special.logsumexp(x.astype(jnp.float32), axis=-1)
    picked = jnp.take_along_axis(
        x.astype(jnp.float32), y.astype(jnp.int32)[:, None], axis=-1
    )[:, 0]
    return jnp.mean(lse - picked)


if __name__ == "__main__":
    key = jax.random.PRNGKey(0)
    kx, ky = jax.random.split(key)
    N, C = 8, 32
    x_f32 = jax.random.normal(kx, (N, C), dtype=jnp.float32)
    x = x_f32.astype(jnp.bfloat16)   # feed native bf16: half the HBM read traffic
    y = jax.random.randint(ky, (N,), 0, C, dtype=jnp.int32)

    loss = softmax_cross_entropy(x, y)
    jax.block_until_ready(loss)

    # Reference uses the same bf16-quantized logits upcast to f32, so the
    # comparison stays tight even though the kernel input is bf16.
    ref = _reference(x.astype(jnp.float32), y)
    assert jnp.allclose(loss, ref, atol=1e-5, rtol=1e-5), (loss, ref)
    print("KERNEL_OK")
</pallas_src>

<mosaic_0001>
module attributes {stable_mosaic.version = 11 : i64} {
  func.func @_softmax_xent_rows_kernel(%arg0: i32, %arg1: memref<8x32xbf16, #tpu.memory_space<vmem>>, %arg2: memref<8x1xi32, #tpu.memory_space<vmem>>, %arg3: memref<8x1xf32, #tpu.memory_space<vmem>>) attributes {dimension_semantics = [#tpu.dimension_semantics<parallel>], iteration_bounds = array<i64: 1>, scalar_prefetch = 0 : i64, scratch_operands = 0 : i64, tpu.core_type = #tpu.core_type<tc>, window_params = [{transform_indices = @transform_0, window_bounds = array<i64: 8, 32>}, {transform_indices = @transform_1, window_bounds = array<i64: 8, 1>}, {transform_indices = @transform_2, window_bounds = array<i64: 8, 1>}]} {
    %c0 = arith.constant 0 : index
    %c0_0 = arith.constant 0 : index
    %0 = vector.load %arg1[%c0, %c0_0] : memref<8x32xbf16, #tpu.memory_space<vmem>>, vector<8x32xbf16>
    %1 = arith.extf %0 : vector<8x32xbf16> to vector<8x32xf32>
    %c0_1 = arith.constant 0 : index
    %c0_2 = arith.constant 0 : index
    %2 = vector.load %arg2[%c0_1, %c0_2] : memref<8x1xi32, #tpu.memory_space<vmem>>, vector<8x1xi32>
    %3 = tpu.iota {dimensions = array<i32: 0>} : vector<8x1xi32>
    %c8_i32 = arith.constant 8 : i32
    %4 = arith.muli %arg0, %c8_i32 : i32
    %5 = vector.broadcast %4 : i32 to vector<8x1xi32>
    %6 = arith.addi %3, %5 : vector<8x1xi32>
    %c8_i32_3 = arith.constant 8 : i32
    %7 = vector.broadcast %c8_i32_3 : i32 to vector<8x1xi32>
    %8 = arith.cmpi slt, %6, %7 : vector<8x1xi32>
    %cst = arith.constant 0.000000e+00 : f32
    %9 = vector.shape_cast %8 : vector<8x1xi1> to vector<8x1xi1>
    %10 = vector.broadcast %9 : vector<8x1xi1> to vector<8x32xi1>
    %11 = vector.broadcast %cst : f32 to vector<8x32xf32>
    %12 = arith.select %10, %1, %11 : vector<8x32xi1>, vector<8x32xf32>
    %cst_4 = arith.constant dense<0xFF800000> : vector<8xf32>
    %13 = vector.multi_reduction <maximumf>, %12, %cst_4 [1] : vector<8x32xf32> to vector<8xf32>
    %14 = vector.shape_cast %13 : vector<8xf32> to vector<8x1xf32>
    %15 = vector.broadcast %14 : vector<8x1xf32> to vector<8x32xf32>
    %16 = arith.subf %12, %15 : vector<8x32xf32>
    %17 = math.exp %16 : vector<8x32xf32>
    %cst_5 = arith.constant dense<0.000000e+00> : vector<8xf32>
    %18 = vector.multi_reduction <add>, %17, %cst_5 [1] : vector<8x32xf32> to vector<8xf32>
    %19 = vector.shape_cast %18 : vector<8xf32> to vector<8x1xf32>
    %20 = math.log %19 : vector<8x1xf32>
    %21 = arith.addf %14, %20 : vector<8x1xf32>
    %22 = tpu.iota {dimensions = array<i32: 1>} : vector<8x32xi32>
    %23 = vector.broadcast %2 : vector<8x1xi32> to vector<8x32xi32>
    %24 = arith.cmpi eq, %22, %23 : vector<8x32xi32>
    %cst_6 = arith.constant 0.000000e+00 : f32
    %25 = vector.broadcast %cst_6 : f32 to vector<8x32xf32>
    %26 = arith.select %24, %12, %25 : vector<8x32xi1>, vector<8x32xf32>
    %cst_7 = arith.constant dense<0.000000e+00> : vector<8xf32>
    %27 = vector.multi_reduction <add>, %26, %cst_7 [1] : vector<8x32xf32> to vector<8xf32>
    %28 = vector.shape_cast %27 : vector<8xf32> to vector<8x1xf32>
    %29 = arith.subf %21, %28 : vector<8x1xf32>
    %cst_8 = arith.constant 0.000000e+00 : f32
    %30 = vector.broadcast %cst_8 : f32 to vector<8x1xf32>
    %31 = arith.select %8, %29, %30 : vector<8x1xi1>, vector<8x1xf32>
    %c0_9 = arith.constant 0 : index
    %c0_10 = arith.constant 0 : index
    %32 = vector.load %arg3[%c0_9, %c0_10] : memref<8x1xf32, #tpu.memory_space<vmem>>, vector<8x1xf32>
    tpu.vector_store %arg3[%c0_9, %c0_10], %31 {strides = array<i32>} : memref<8x1xf32, #tpu.memory_space<vmem>>, vector<8x1xf32>,
    return
  }
  func.func @transform_0(%arg0: i32) -> (i32, i32) {
    %c0_i32 = arith.constant 0 : i32
    %c0_i32_0 = arith.constant 0 : i32
    return %arg0, %c0_i32 : i32, i32
  }
  func.func @transform_1(%arg0: i32) -> (i32, i32) {
    %c0_i32 = arith.constant 0 : i32
    %c0_i32_0 = arith.constant 0 : i32
    return %arg0, %c0_i32 : i32, i32
  }
  func.func @transform_2(%arg0: i32) -> (i32, i32) {
    %c0_i32 = arith.constant 0 : i32
    %c0_i32_0 = arith.constant 0 : i32
    return %arg0, %c0_i32 : i32, i32
  }
}

</mosaic_0001>

<llo_original>
// kernel: tpu_custom_call.1
$region0: #{tpu_custom_call.1}
  #allocation0 [shape = 'u32[]', space=smem, size = 0x4, offset = 0x4, fixed_abs, tag = 'smem constant byte address 0x4 - core index']
  #allocation1 [shape = 'u32[144,128]{1,0:T(1,128)}', space=vmem, size = 0x12000, scoped, tag = 'internal scratch']
  %s0 = inlined_call_operand.vmem [shape: bf16[8,32], index: 0, kind: input, shape index: {}]
  %s1 = inlined_call_operand.vmem [shape: s32[8,1], index: 1, kind: input, shape index: {}]
  %s2 = inlined_call_operand.vmem [shape: f32[8,1], index: 2, kind: output, shape index: {}]
  %s3 = sld [smem:[#allocation0]]
  $region18: #{tpu_custom_call.1} parent=0
    _
  %s5 = ssub.s32 1, %s3
  %s6 = scalar_select 0, %s5, %s3
  // Predicated region
  $region2: #{tpu_custom_call.1} parent=0 // pred_check
    _
  $region3: #{tpu_custom_call.1} parent=0 // pred_check_branch
    %8 = sbr.rel (0) target = $region5
  $region4: #{tpu_custom_call.1} parent=0 // pred_region
    _
  $region5: #{tpu_custom_call.1} parent=0 // pred_fallthru
    _
  // Predicated region
  $region6: #{tpu_custom_call.1} parent=0 // pred_check
    _
  $region7: #{tpu_custom_call.1} parent=0 // pred_check_branch
    %10 = sbr.rel (0) target = $region9
  $region8: #{tpu_custom_call.1} parent=0 // pred_region
    _
  $region9: #{tpu_custom_call.1} parent=0 // pred_fallthru
    _
  %v11 = vld [vmem:[%s0] sm:$0xf]
  %v12 = vunpack.c.l.bf16 %v11
  %v13 = vld [vmem:[%s1] sm:$0xff]
  %v14 = vlaneseq
  %v15 = vshrl.u32 %v14, 7
  %s16 = smul.u32 0, 8
  %v17 = vstv %s16
  %v18 = vadd.s32 %v15, %v17
  %vm19 = vcmp.lt.s32.totalorder %v18, 8
  %v20 = vsel %vm19, 1, 0
  %vm21 = vcmp.eq.s32.totalorder %v20, 1
  %v22 = vsel %vm21, %v12, 0.0
  %vm23 = vcmask 261120
  %v24 = vsel %vm23, %v22, -inf
  %25 = vmax.xlane.f32.xlu0 %v24
  %v26 = vpop.xlane.xlu0 %25
  %v27 = vsub.f32 %v22, %v26
  %v28 = vmul.f32 %v27, 1.442695
  %v29 = vpow.pop %v28
  %v30 = vsel %vm23, %v29, 0.0
  %31 = vadd.xlane.f32.xlu0 %v30
  %v32 = vpop.xlane.xlu0 %31
  %v33 = vlog2.pop %v32
  %v34 = vmul.f32 %v33, 0.6931472
  %v35 = vadd.f32 %v26, %v34
  %v36 = vlaneseq
  %v37 = vand.u32 %v36, 127
  %38 = vset.pattern.permute.xlu0 0
  %39 = vperm.xlu0 %38, %v13
  %v40 = vpop.permute.xlu0 %39
  %vm41 = vcmp.eq.s32.totalorder %v37, %v40
  %v42 = vsel %vm41, %v22, 0.0
  %v43 = vsel %vm23, %v42, 0.0
  %44 = vadd.xlane.f32.xlu0 %v43
  %v45 = vpop.xlane.xlu0 %44
  %v46 = vsub.f32 %v35, %v45
  %v47 = vsel %vm19, %v46, 0.0
  %vm48 = vcmask 7168
  %49 = vst.msk [vmem:[%s2] sm:$0xff] %vm48, %v47
  // Predicated region
  $region10: #{tpu_custom_call.1} parent=0 // pred_check
    _
  $region11: #{tpu_custom_call.1} parent=0 // pred_check_branch
    %51 = sbr.rel (0) target = $region13
  $region12: #{tpu_custom_call.1} parent=0 // pred_region
    _
  $region13: #{tpu_custom_call.1} parent=0 // pred_fallthru
    _
  // Predicated region
  $region14: #{tpu_custom_call.1} parent=0 // pred_check
    _
  $region15: #{tpu_custom_call.1} parent=0 // pred_check_branch
    %53 = sbr.rel (0) target = $region17
  $region16: #{tpu_custom_call.1} parent=0 // pred_region
    _
  $region17: #{tpu_custom_call.1} parent=0 // pred_fallthru
    _

</llo_original>
